<compile_context>
chip_gen: v6e
topology: v6e:2x2x1
jax: 0.10.0
libtpu: 0.0.40
codegen_flags: <defaults>
</compile_context>

<pallas_src>
import jax
import jax.numpy as jnp
from jax.experimental import pallas as pl
from jax.experimental.pallas import tpu as pltpu

LANE = 128  # vreg / MXU lane width; F, H, K are all padded to this.


def _diffusion_trainer_kernel(
    coef_a_ref,      # (TM, 1)    f32  VMEM   sqrt_alphas_bar[t]            per row
    coef_b_ref,      # (TM, 1)    f32  VMEM   sqrt_one_minus_alphas_bar[t]  per row
    x0_ref,          # (TM, 128)  f32  VMEM   x_0 rows (lanes [0:F], rest 0)
    noise_ref,       # (TM, 128)  f32  VMEM   noise rows (lanes [0:F], rest 0)
    lhs_static_ref,  # (TM, 128)  bf16 VMEM   [0 | cond_mean | onehot(t) | 0] per row
    wf_ref,          # (128, 128) bf16 VMEM   fused [W1 ; Wc ; Wt+b1 ; 0]   (resident)
    w2_ref,          # (128, 128) bf16 VMEM   W2 zero-padded                (resident)
    b2_ref,          # (1, 128)   f32  VMEM   b2 zero-padded                (resident)
    loss_ref,        # (TM, 128)  f32  VMEM   out (lane-dense squared error)
):
    noise = noise_ref[...]

    # ---- q(x_t | x_0): forward diffusion noising (f32, padding lanes stay 0) ----
    x_t = coef_a_ref[...] * x0_ref[...] + coef_b_ref[...] * noise        # (TM, 128)

    # ---- fused conditional MLP: one MXU dot replaces three sub-128-K matmuls ----
    # LHS = [x_t | cond_mean | onehot(t) | 0]; static lanes were prebuilt (bf16)
    # in the wrapper and are zero where x_t lives, so the add is exact.
    lhs = (x_t + lhs_static_ref[...].astype(jnp.float32)).astype(jnp.bfloat16)
    h = jnp.dot(lhs, wf_ref[...], preferred_element_type=jnp.float32)    # (TM, 128)
    h = jnp.maximum(h, 0.0)                                              # relu (b1 folded)

    eps_hat = jnp.dot(h.astype(jnp.bfloat16), w2_ref[...],
                      preferred_element_type=jnp.float32) + b2_ref[...]  # (TM, 128)

    # ---- F.mse_loss(..., reduction='none'), lane-dense store ----
    diff = eps_hat - noise
    loss_ref[...] = diff * diff


def make_schedule(beta_1, beta_T, T):
    """Replicates register_buffer math from __init__ (float32)."""
    betas = jnp.linspace(beta_1, beta_T, T, dtype=jnp.float32)
    alphas = 1.0 - betas
    alphas_bar = jnp.cumprod(alphas, axis=0)
    return jnp.sqrt(alphas_bar), jnp.sqrt(1.0 - alphas_bar)


@jax.jit
def gaussian_diffusion_trainer_forward(x_0, condition, t, noise, params):
    """
    x_0:       (B, t_pred, N, 3)
    condition: (B, t_his,  N, 3)
    t:         (B,) int32 in [0, T)
    noise:     same shape as x_0
    Returns elementwise loss of shape (B, t_pred, N, 3)  (reduction='none').
    """
    B, Tp, N, D = x_0.shape
    Th = condition.shape[1]
    F = N * D
    T = params["wt"].shape[0]
    H = params["w1"].shape[1]

    rows = B * Tp
    assert rows % 8 == 0, "B * t_pred must be a multiple of 8 (sublane tile)"
    assert 2 * F + T <= LANE and H <= LANE and F <= LANE

    f32 = jnp.float32
    bf16 = jnp.bfloat16

    # ---- row tiling: one big tile when small, 512-row tiles when large --------
    TM = rows if rows <= 512 else 512
    n_tiles = -(-rows // TM)
    rows_pad = n_tiles * TM

    # ---- extract(): schedule gather -> per-row coefficient columns (glue) ----
    coef_a_rows = jnp.repeat(params["sqrt_alphas_bar"][t].astype(f32), Tp)[:, None]
    coef_b_rows = jnp.repeat(params["sqrt_one_minus_alphas_bar"][t].astype(f32), Tp)[:, None]

    # ---- lane-padded, pre-flattened activations (layout plumbing only) ----
    x0_rows = jnp.pad(x_0.reshape(rows, F).astype(f32), ((0, 0), (0, LANE - F)))
    noise_rows = jnp.pad(noise.reshape(rows, F).astype(f32), ((0, 0), (0, LANE - F)))

    # ---- static part of the fused LHS: [0:F]=0 (x_t slot), [F:2F]=cond_mean,
    #      [2F:2F+T]=onehot(t), rest 0.  One row per (batch, frame), bf16 stream.
    cond_mean = jnp.mean(condition.reshape(B, Th, F).astype(f32), axis=1)   # (B, F)
    onehot = jax.nn.one_hot(t, T, dtype=f32)                                # (B, T)
    lhs_static_b = jnp.concatenate(
        [jnp.zeros((B, F), f32), cond_mean, onehot,
         jnp.zeros((B, LANE - 2 * F - T), f32)], axis=1)                    # (B, 128)
    lhs_static_rows = jnp.broadcast_to(
        lhs_static_b[:, None, :], (B, Tp, LANE)).reshape(rows, LANE).astype(bf16)

    # ---- pad rows up to a whole number of tiles (stripped after the call) ----
    if rows_pad > rows:
        pad_r = ((0, rows_pad - rows), (0, 0))
        coef_a_rows = jnp.pad(coef_a_rows, pad_r)
        coef_b_rows = jnp.pad(coef_b_rows, pad_r)
        x0_rows = jnp.pad(x0_rows, pad_r)
        noise_rows = jnp.pad(noise_rows, pad_r)
        lhs_static_rows = jnp.pad(lhs_static_rows, pad_r)

    # ---- fused / zero-padded bf16 weights (would be prepared once at init) ----
    wf = jnp.zeros((LANE, LANE), f32)
    wf = wf.at[:F, :H].set(params["w1"])
    wf = wf.at[F:2 * F, :H].set(params["wc"])
    wf = wf.at[2 * F:2 * F + T, :H].set(params["wt"] + params["b1"])  # fold b1 via one-hot
    wf = wf.astype(bf16)
    w2p = jnp.zeros((LANE, LANE), f32).at[:H, :F].set(params["w2"]).astype(bf16)
    b2p = jnp.zeros((1, LANE), f32).at[:, :F].set(params["b2"])

    loss_pad = pl.pallas_call(
        _diffusion_trainer_kernel,
        out_shape=jax.ShapeDtypeStruct((rows_pad, LANE), f32),
        grid=(n_tiles,),
        in_specs=[
            pl.BlockSpec((TM, 1), lambda i: (i, 0)),                # coef_a column
            pl.BlockSpec((TM, 1), lambda i: (i, 0)),                # coef_b column
            pl.BlockSpec((TM, LANE), lambda i: (i, 0)),             # x0 rows
            pl.BlockSpec((TM, LANE), lambda i: (i, 0)),             # noise rows
            pl.BlockSpec((TM, LANE), lambda i: (i, 0)),             # lhs_static rows (bf16)
            pl.BlockSpec((LANE, LANE), lambda i: (0, 0)),           # W_fused (resident)
            pl.BlockSpec((LANE, LANE), lambda i: (0, 0)),           # W2      (resident)
            pl.BlockSpec((1, LANE), lambda i: (0, 0)),              # b2      (resident)
        ],
        out_specs=pl.BlockSpec((TM, LANE), lambda i: (i, 0)),
        compiler_params=pltpu.CompilerParams(
            dimension_semantics=("parallel",)),                     # shard row tiles
    )(coef_a_rows, coef_b_rows, x0_rows, noise_rows, lhs_static_rows, wf, w2p, b2p)

    # strip row/lane padding and restore (B, t_pred, N, 3)  (pure glue)
    return loss_pad[:rows, :F].reshape(B, Tp, N, D)


if __name__ == "__main__":
    # Small shapes consistent with the module's forward:
    #   x_0 (B, t_pred, N, 3); condition (B, t_his, N, 3)
    B, Tp, Th, N, D = 2, 8, 4, 16, 3
    F = N * D          # 48
    H = 32             # synthetic model hidden size
    T = 16             # diffusion steps
    beta_1, beta_T = 1e-4, 0.02

    key = jax.random.PRNGKey(0)
    k_x, k_c, k_t, k_n, k_w1, k_wc, k_wt, k_b1, k_w2, k_b2 = jax.random.split(key, 10)

    x_0 = jax.random.normal(k_x, (B, Tp, N, D), dtype=jnp.float32)
    condition = jax.random.normal(k_c, (B, Th, N, D), dtype=jnp.float32)
    # torch.randint(T, (B,)) and torch.randn_like(x_0), done deterministically in JAX.
    t = jax.random.randint(k_t, (B,), 0, T, dtype=jnp.int32)
    noise = jax.random.normal(k_n, (B, Tp, N, D), dtype=jnp.float32)

    sqrt_ab, sqrt_1m_ab = make_schedule(beta_1, beta_T, T)
    params = {
        "sqrt_alphas_bar": sqrt_ab,
        "sqrt_one_minus_alphas_bar": sqrt_1m_ab,
        # deterministic synthetic model weights
        "w1": 0.1 * jax.random.normal(k_w1, (F, H), dtype=jnp.float32),
        "wc": 0.1 * jax.random.normal(k_wc, (F, H), dtype=jnp.float32),
        "wt": 0.1 * jax.random.normal(k_wt, (T, H), dtype=jnp.float32),
        "b1": 0.1 * jax.random.normal(k_b1, (1, H), dtype=jnp.float32),
        "w2": 0.1 * jax.random.normal(k_w2, (H, F), dtype=jnp.float32),
        "b2": 0.1 * jax.random.normal(k_b2, (1, F), dtype=jnp.float32),
    }

    loss = gaussian_diffusion_trainer_forward(x_0, condition, t, noise, params)
    jax.block_until_ready(loss)
    assert loss.shape == (B, Tp, N, D)

    # ---- pure-JAX reference of the same model (bf16 weights, f32 accumulation) ----
    bf16 = jnp.bfloat16
    coef_a = sqrt_ab[t].reshape(B, 1, 1, 1)
    coef_b = sqrt_1m_ab[t].reshape(B, 1, 1, 1)
    x_t_ref = coef_a * x_0 + coef_b * noise
    cond_mean = jnp.mean(condition.reshape(B, Th, F), axis=1)
    onehot = jax.nn.one_hot(t, T, dtype=jnp.float32)
    pre = (
        jnp.dot(x_t_ref.reshape(B * Tp, F).astype(bf16), params["w1"].astype(bf16),
                preferred_element_type=jnp.float32).reshape(B, Tp, H)
        + (jnp.dot(cond_mean.astype(bf16), params["wc"].astype(bf16),
                   preferred_element_type=jnp.float32)
           + jnp.dot(onehot.astype(bf16),
                     (params["wt"] + params["b1"]).astype(bf16),   # b1 folded, as in kernel
                     preferred_element_type=jnp.float32))[:, None, :]
    )
    h_ref = jnp.maximum(pre, 0.0)
    out_ref = jnp.dot(h_ref.reshape(B * Tp, H).astype(bf16), params["w2"].astype(bf16),
                      preferred_element_type=jnp.float32) + params["b2"]
    loss_ref = (out_ref.reshape(B, Tp, N, D) - noise) ** 2

    assert jnp.allclose(loss, loss_ref, atol=1e-2, rtol=1e-2), (
        float(jnp.max(jnp.abs(loss - loss_ref))))

    print("KERNEL_OK")
</pallas_src>

<mosaic_0001>
module attributes {stable_mosaic.version = 11 : i64} {
  func.func @_diffusion_trainer_kernel(%arg0: i32, %arg1: memref<16x1xf32, #tpu.memory_space<vmem>>, %arg2: memref<16x1xf32, #tpu.memory_space<vmem>>, %arg3: memref<16x128xf32, #tpu.memory_space<vmem>>, %arg4: memref<16x128xf32, #tpu.memory_space<vmem>>, %arg5: memref<16x128xbf16, #tpu.memory_space<vmem>>, %arg6: memref<128x128xbf16, #tpu.memory_space<vmem>>, %arg7: memref<128x128xbf16, #tpu.memory_space<vmem>>, %arg8: memref<1x128xf32, #tpu.memory_space<vmem>>, %arg9: memref<16x128xf32, #tpu.memory_space<vmem>>) attributes {dimension_semantics = [#tpu.dimension_semantics<parallel>], iteration_bounds = array<i64: 1>, scalar_prefetch = 0 : i64, scratch_operands = 0 : i64, tpu.core_type = #tpu.core_type<tc>, window_params = [{transform_indices = @transform_0, window_bounds = array<i64: 16, 1>}, {transform_indices = @transform_1, window_bounds = array<i64: 16, 1>}, {transform_indices = @transform_2, window_bounds = array<i64: 16, 128>}, {transform_indices = @transform_3, window_bounds = array<i64: 16, 128>}, {transform_indices = @transform_4, window_bounds = array<i64: 16, 128>}, {pipeline_mode = #tpu.pipeline_mode<synchronous>, transform_indices = @transform_5, window_bounds = array<i64: 128, 128>}, {pipeline_mode = #tpu.pipeline_mode<synchronous>, transform_indices = @transform_6, window_bounds = array<i64: 128, 128>}, {pipeline_mode = #tpu.pipeline_mode<synchronous>, transform_indices = @transform_7, window_bounds = array<i64: 1, 128>}, {transform_indices = @transform_8, window_bounds = array<i64: 16, 128>}]} {
    %c0 = arith.constant 0 : index
    %c0_0 = arith.constant 0 : index
    %0 = vector.load %arg4[%c0, %c0_0] : memref<16x128xf32, #tpu.memory_space<vmem>>, vector<16x128xf32>
    %c0_1 = arith.constant 0 : index
    %c0_2 = arith.constant 0 : index
    %1 = vector.load %arg1[%c0_1, %c0_2] : memref<16x1xf32, #tpu.memory_space<vmem>>, vector<16x1xf32>
    %c0_3 = arith.constant 0 : index
    %c0_4 = arith.constant 0 : index
    %2 = vector.load %arg3[%c0_3, %c0_4] : memref<16x128xf32, #tpu.memory_space<vmem>>, vector<16x128xf32>
    %3 = vector.broadcast %1 : vector<16x1xf32> to vector<16x128xf32>
    %4 = arith.mulf %3, %2 : vector<16x128xf32>
    %c0_5 = arith.constant 0 : index
    %c0_6 = arith.constant 0 : index
    %5 = vector.load %arg2[%c0_5, %c0_6] : memref<16x1xf32, #tpu.memory_space<vmem>>, vector<16x1xf32>
    %6 = vector.broadcast %5 : vector<16x1xf32> to vector<16x128xf32>
    %7 = arith.mulf %6, %0 : vector<16x128xf32>
    %8 = arith.addf %4, %7 : vector<16x128xf32>
    %c0_7 = arith.constant 0 : index
    %c0_8 = arith.constant 0 : index
    %9 = vector.load %arg5[%c0_7, %c0_8] : memref<16x128xbf16, #tpu.memory_space<vmem>>, vector<16x128xbf16>
    %10 = arith.extf %9 : vector<16x128xbf16> to vector<16x128xf32>
    %11 = arith.addf %8, %10 : vector<16x128xf32>
    %12 = arith.truncf %11 : vector<16x128xf32> to vector<16x128xbf16>
    %c0_9 = arith.constant 0 : index
    %c0_10 = arith.constant 0 : index
    %13 = vector.load %arg6[%c0_9, %c0_10] : memref<128x128xbf16, #tpu.memory_space<vmem>>, vector<128x128xbf16>
    %cst = arith.constant dense<0.000000e+00> : vector<16x128xf32>
    %14 = tpu.matmul %12, %13, %cst {dimension_numbers = #tpu.dot_dimension_numbers<[1], [0], [0], [1], [0, 0, 1, 1], [], []>} : vector<16x128xbf16>, vector<128x128xbf16>, vector<16x128xf32> -> vector<16x128xf32>
    %cst_11 = arith.constant 0.000000e+00 : f32
    %15 = vector.broadcast %cst_11 : f32 to vector<16x128xf32>
    %16 = arith.maximumf %14, %15 : vector<16x128xf32>
    %17 = arith.truncf %16 : vector<16x128xf32> to vector<16x128xbf16>
    %c0_12 = arith.constant 0 : index
    %c0_13 = arith.constant 0 : index
    %18 = vector.load %arg7[%c0_12, %c0_13] : memref<128x128xbf16, #tpu.memory_space<vmem>>, vector<128x128xbf16>
    %cst_14 = arith.constant dense<0.000000e+00> : vector<16x128xf32>
    %19 = tpu.matmul %17, %18, %cst_14 {dimension_numbers = #tpu.dot_dimension_numbers<[1], [0], [0], [1], [0, 0, 1, 1], [], []>} : vector<16x128xbf16>, vector<128x128xbf16>, vector<16x128xf32> -> vector<16x128xf32>
    %c0_15 = arith.constant 0 : index
    %c0_16 = arith.constant 0 : index
    %20 = vector.load %arg8[%c0_15, %c0_16] : memref<1x128xf32, #tpu.memory_space<vmem>>, vector<1x128xf32>
    %21 = vector.broadcast %20 : vector<1x128xf32> to vector<16x128xf32>
    %22 = arith.addf %19, %21 : vector<16x128xf32>
    %23 = arith.subf %22, %0 : vector<16x128xf32>
    %24 = arith.mulf %23, %23 : vector<16x128xf32>
    %c0_17 = arith.constant 0 : index
    %c0_18 = arith.constant 0 : index
    %25 = vector.load %arg9[%c0_17, %c0_18] : memref<16x128xf32, #tpu.memory_space<vmem>>, vector<16x128xf32>
    tpu.vector_store %arg9[%c0_17, %c0_18], %24 {strides = array<i32>} : memref<16x128xf32, #tpu.memory_space<vmem>>, vector<16x128xf32>,
    return
  }
  func.func @transform_0(%arg0: i32) -> (i32, i32) {
    %c0_i32 = arith.constant 0 : i32
    %c0_i32_0 = arith.constant 0 : i32
    return %arg0, %c0_i32 : i32, i32
  }
  func.func @transform_1(%arg0: i32) -> (i32, i32) {
    %c0_i32 = arith.constant 0 : i32
    %c0_i32_0 = arith.constant 0 : i32
    return %arg0, %c0_i32 : i32, i32
  }
  func.func @transform_2(%arg0: i32) -> (i32, i32) {
    %c0_i32 = arith.constant 0 : i32
    %c0_i32_0 = arith.constant 0 : i32
    return %arg0, %c0_i32 : i32, i32
  }
  func.func @transform_3(%arg0: i32) -> (i32, i32) {
    %c0_i32 = arith.constant 0 : i32
    %c0_i32_0 = arith.constant 0 : i32
    return %arg0, %c0_i32 : i32, i32
  }
  func.func @transform_4(%arg0: i32) -> (i32, i32) {
    %c0_i32 = arith.constant 0 : i32
    %c0_i32_0 = arith.constant 0 : i32
    return %arg0, %c0_i32 : i32, i32
  }
  func.func @transform_5(%arg0: i32) -> (i32, i32) {
    %c0_i32 = arith.constant 0 : i32
    %c0_i32_0 = arith.constant 0 : i32
    %c0_i32_1 = arith.constant 0 : i32
    return %c0_i32, %c0_i32_0 : i32, i32
  }
  func.func @transform_6(%arg0: i32) -> (i32, i32) {
    %c0_i32 = arith.constant 0 : i32
    %c0_i32_0 = arith.constant 0 : i32
    %c0_i32_1 = arith.constant 0 : i32
    return %c0_i32, %c0_i32_0 : i32, i32
  }
  func.func @transform_7(%arg0: i32) -> (i32, i32) {
    %c0_i32 = arith.constant 0 : i32
    %c0_i32_0 = arith.constant 0 : i32
    %c0_i32_1 = arith.constant 0 : i32
    return %c0_i32, %c0_i32_0 : i32, i32
  }
  func.func @transform_8(%arg0: i32) -> (i32, i32) {
    %c0_i32 = arith.constant 0 : i32
    %c0_i32_0 = arith.constant 0 : i32
    return %arg0, %c0_i32 : i32, i32
  }
}

</mosaic_0001>

<llo_original>
// kernel: gaussian_diffusion_trainer_forward.1
$region0: #{gaussian_diffusion_trainer_forward.1}
  #allocation0 [shape = 'u32[]', space=smem, size = 0x4, offset = 0x4, fixed_abs, tag = 'smem constant byte address 0x4 - core index']
  #allocation1 [shape = 'u32[144,128]{1,0:T(1,128)}', space=vmem, size = 0x12000, scoped, tag = 'internal scratch']
  %s0 = inlined_call_operand.vmem [shape: f32[16,1], index: 0, kind: input, shape index: {}]
  %s1 = inlined_call_operand.vmem [shape: f32[16,1], index: 1, kind: input, shape index: {}]
  %s2 = inlined_call_operand.vmem [shape: f32[16,128], index: 2, kind: input, shape index: {}]
  %s3 = inlined_call_operand.vmem [shape: f32[16,128], index: 3, kind: input, shape index: {}]
  %s4 = inlined_call_operand.vmem [shape: bf16[16,128], index: 4, kind: input, shape index: {}]
  %s5 = inlined_call_operand.vmem [shape: bf16[128,128], index: 5, kind: input, shape index: {}]
  %s6 = inlined_call_operand.vmem [shape: bf16[128,128], index: 6, kind: input, shape index: {}]
  %s7 = inlined_call_operand.vmem [shape: f32[1,128], index: 7, kind: input, shape index: {}]
  %s8 = inlined_call_operand.vmem [shape: f32[16,128], index: 8, kind: output, shape index: {}]
  %s9 = sld [smem:[#allocation0]]
  $region42: #{gaussian_diffusion_trainer_forward.1} parent=0
    _
  %s11 = ssub.s32 1, %s9
  %s12 = scalar_select 0, %s11, %s9
  // Predicated region
  $region2: #{gaussian_diffusion_trainer_forward.1} parent=0 // pred_check
    _
  $region3: #{gaussian_diffusion_trainer_forward.1} parent=0 // pred_check_branch
    %14 = sbr.rel (0) target = $region5
  $region4: #{gaussian_diffusion_trainer_forward.1} parent=0 // pred_region
    _
  $region5: #{gaussian_diffusion_trainer_forward.1} parent=0 // pred_fallthru
    _
  // Predicated region
  $region6: #{gaussian_diffusion_trainer_forward.1} parent=0 // pred_check
    _
  $region7: #{gaussian_diffusion_trainer_forward.1} parent=0 // pred_check_branch
    %16 = sbr.rel (0) target = $region9
  $region8: #{gaussian_diffusion_trainer_forward.1} parent=0 // pred_region
    _
  $region9: #{gaussian_diffusion_trainer_forward.1} parent=0 // pred_fallthru
    _
  // Predicated region
  $region10: #{gaussian_diffusion_trainer_forward.1} parent=0 // pred_check
    _
  $region11: #{gaussian_diffusion_trainer_forward.1} parent=0 // pred_check_branch
    %18 = sbr.rel (0) target = $region13
  $region12: #{gaussian_diffusion_trainer_forward.1} parent=0 // pred_region
    _
  $region13: #{gaussian_diffusion_trainer_forward.1} parent=0 // pred_fallthru
    _
  // Predicated region
  $region14: #{gaussian_diffusion_trainer_forward.1} parent=0 // pred_check
    _
  $region15: #{gaussian_diffusion_trainer_forward.1} parent=0 // pred_check_branch
    %20 = sbr.rel (0) target = $region17
  $region16: #{gaussian_diffusion_trainer_forward.1} parent=0 // pred_region
    _
  $region17: #{gaussian_diffusion_trainer_forward.1} parent=0 // pred_fallthru
    _
  // Predicated region
  $region18: #{gaussian_diffusion_trainer_forward.1} parent=0 // pred_check
    _
  $region19: #{gaussian_diffusion_trainer_forward.1} parent=0 // pred_check_branch
    %22 = sbr.rel (0) target = $region21
  $region20: #{gaussian_diffusion_trainer_forward.1} parent=0 // pred_region
    _
  $region21: #{gaussian_diffusion_trainer_forward.1} parent=0 // pred_fallthru
    _
  // Predicated region
  $region22: #{gaussian_diffusion_trainer_forward.1} parent=0 // pred_check
    _
  $region23: #{gaussian_diffusion_trainer_forward.1} parent=0 // pred_check_branch
    %24 = sbr.rel (0) target = $region25
  $region24: #{gaussian_diffusion_trainer_forward.1} parent=0 // pred_region
    _
  $region25: #{gaussian_diffusion_trainer_forward.1} parent=0 // pred_fallthru
    _
  // Predicated region
  $region26: #{gaussian_diffusion_trainer_forward.1} parent=0 // pred_check
    _
  $region27: #{gaussian_diffusion_trainer_forward.1} parent=0 // pred_check_branch
    %26 = sbr.rel (0) target = $region29
  $region28: #{gaussian_diffusion_trainer_forward.1} parent=0 // pred_region
    _
  $region29: #{gaussian_diffusion_trainer_forward.1} parent=0 // pred_fallthru
    _
  // Predicated region
  $region30: #{gaussian_diffusion_trainer_forward.1} parent=0 // pred_check
    _
  $region31: #{gaussian_diffusion_trainer_forward.1} parent=0 // pred_check_branch
    %28 = sbr.rel (0) target = $region33
  $region32: #{gaussian_diffusion_trainer_forward.1} parent=0 // pred_region
    _
  $region33: #{gaussian_diffusion_trainer_forward.1} parent=0 // pred_fallthru
    _
  %v30 = vld [vmem:[%s3] sm:$0xff]
  %v31 = vld [vmem:[%s3 + $0x8] sm:$0xff]
  %v32 = vld [vmem:[%s0] sm:$0xff]
  %v33 = vld [vmem:[%s0 + $0x8] sm:$0xff]
  %v34 = vld [vmem:[%s2] sm:$0xff]
  %v35 = vld [vmem:[%s2 + $0x8] sm:$0xff]
  %37 = vset.pattern.permute.xlu0 0
  %38 = vperm.xlu0 %37, %v32
  %v39 = vpop.permute.xlu0 %38
  %42 = vset.pattern.permute.xlu0 0
  %43 = vperm.xlu0 %42, %v33
  %v44 = vpop.permute.xlu0 %43
  %v46 = vmul.f32 %v39, %v34
  %v47 = vmul.f32 %v44, %v35
  %v48 = vld [vmem:[%s1] sm:$0xff]
  %v49 = vld [vmem:[%s1 + $0x8] sm:$0xff]
  %51 = vset.pattern.permute.xlu0 0
  %52 = vperm.xlu0 %51, %v48
  %v53 = vpop.permute.xlu0 %52
  %56 = vset.pattern.permute.xlu0 0
  %57 = vperm.xlu0 %56, %v49
  %v58 = vpop.permute.xlu0 %57
  %v60 = vmul.f32 %v53, %v30
  %v61 = vmul.f32 %v58, %v31
  %v62 = vadd.f32 %v46, %v60
  %v63 = vadd.f32 %v47, %v61
  %v64 = vld [vmem:[%s4] sm:$0xf]
  %v65 = vld [vmem:[%s4 + $0x4] sm:$0xf]
  %v66 = vunpack.c.l.bf16 %v64
  %v67 = vunpack.c.l.bf16 %v65
  %v68 = vadd.f32 %v62, %v66
  %v69 = vadd.f32 %v63, %v67
  %v70 = vpack.c.bf16 %v69, %v68
  %v71 = vld [vmem:[%s5] sm:$0xf]
  %v72 = vld [vmem:[%s5 + $0x4] sm:$0xf]
  %v73 = vld [vmem:[%s5 + $0x8] sm:$0xf]
  %v74 = vld [vmem:[%s5 + $0xc] sm:$0xf]
  %v75 = vld [vmem:[%s5 + $0x10] sm:$0xf]
  %v76 = vld [vmem:[%s5 + $0x14] sm:$0xf]
  %v77 = vld [vmem:[%s5 + $0x18] sm:$0xf]
  %v78 = vld [vmem:[%s5 + $0x1c] sm:$0xf]
  %v79 = vld [vmem:[%s5 + $0x20] sm:$0xf]
  %v80 = vld [vmem:[%s5 + $0x24] sm:$0xf]
  %v81 = vld [vmem:[%s5 + $0x28] sm:$0xf]
  %v82 = vld [vmem:[%s5 + $0x2c] sm:$0xf]
  %v83 = vld [vmem:[%s5 + $0x30] sm:$0xf]
  %v84 = vld [vmem:[%s5 + $0x34] sm:$0xf]
  %v85 = vld [vmem:[%s5 + $0x38] sm:$0xf]
  %v86 = vld [vmem:[%s5 + $0x3c] sm:$0xf]
  %v103 = vunpack.c.l.b16 %v71
  %v104 = vunpack.c.l.b16 %v72
  %v105 = vunpack.c.l.b16 %v73
  %v106 = vunpack.c.l.b16 %v74
  %v107 = vunpack.c.l.b16 %v75
  %v108 = vunpack.c.l.b16 %v76
  %v109 = vunpack.c.l.b16 %v77
  %v110 = vunpack.c.l.b16 %v78
  %v111 = vunpack.c.l.b16 %v79
  %v112 = vunpack.c.l.b16 %v80
  %v113 = vunpack.c.l.b16 %v81
  %v114 = vunpack.c.l.b16 %v82
  %v115 = vunpack.c.l.b16 %v83
  %v116 = vunpack.c.l.b16 %v84
  %v117 = vunpack.c.l.b16 %v85
  %v118 = vunpack.c.l.b16 %v86
  %v119 = vpack.c.b16 %v104, %v103
  %v120 = vpack.c.b16 %v106, %v105
  %v121 = vpack.c.b16 %v108, %v107
  %v122 = vpack.c.b16 %v110, %v109
  %v123 = vpack.c.b16 %v112, %v111
  %v124 = vpack.c.b16 %v114, %v113
  %v125 = vpack.c.b16 %v116, %v115
  %v126 = vpack.c.b16 %v118, %v117
  %135 = vmatprep.subr.bf16.mxu0 0
  %136 = vmatpush1.bf16.msra.mxu0 %v126
  %137 = vmatprep.subr.bf16.mxu0 0
  %138 = vmatpush1.bf16.msra.mxu0 %v125
  %139 = vmatprep.subr.bf16.mxu0 0
  %140 = vmatpush1.bf16.msra.mxu0 %v124
  %141 = vmatprep.subr.bf16.mxu0 0
  %142 = vmatpush1.bf16.msra.mxu0 %v123
  %143 = vmatprep.subr.bf16.mxu0 0
  %144 = vmatpush1.bf16.msra.mxu0 %v122
  %145 = vmatprep.subr.bf16.mxu0 0
  %146 = vmatpush1.bf16.msra.mxu0 %v121
  %147 = vmatprep.subr.bf16.mxu0 0
  %148 = vmatpush1.bf16.msra.mxu0 %v120
  %149 = vmatprep.subr.bf16.mxu0 0
  %150 = vmatpush1.bf16.msra.mxu0 %v119
  %151 = vmatprep.subr.bf16.mxu0 0
  %152 = vmatpush2.bf16.msra.mxu0 0
  %153 = vmatprep.subr.bf16.mxu0 0
  %154 = vmatpush2.bf16.msra.mxu0 0
  %155 = vmatprep.subr.bf16.mxu0 0
  %156 = vmatpush2.bf16.msra.mxu0 0
  %157 = vmatprep.subr.bf16.mxu0 0
  %158 = vmatpush2.bf16.msra.mxu0 0
  %159 = vmatprep.subr.bf16.mxu0 0
  %160 = vmatpush2.bf16.msra.mxu0 0
  %161 = vmatprep.subr.bf16.mxu0 0
  %162 = vmatpush2.bf16.msra.mxu0 0
  %163 = vmatprep.subr.bf16.mxu0 0
  %164 = vmatpush2.bf16.msra.mxu0 0
  %165 = vmatprep.subr.bf16.mxu0 0
  %166 = vmatpush2.bf16.msra.mxu0 0
  %167 = vmatprep.mubr.bf16.mxu0 0
  %168 = vmatmul.mubr.bf16.gmra.mxu0 %v70
  %v169 = vpop.f32.mrf.mxu0
  %v170 = vadd.f32 0.0, %v169
  %v171 = vpop.f32.mrf.mxu0
  %v172 = vpop.f32.mrf.mxu0
  %v173 = vadd.f32 0.0, %v172
  %v174 = vpop.f32.mrf.mxu0
  %175 = vdwg.mxu0
  %v176 = vmax.f32 %v170, 0.0
  %v177 = vmax.f32 %v173, 0.0
  %v178 = vpack.c.bf16 %v177, %v176
  %v179 = vld [vmem:[%s6] sm:$0xf]
  %v180 = vld [vmem:[%s6 + $0x4] sm:$0xf]
  %v181 = vld [vmem:[%s6 + $0x8] sm:$0xf]
  %v182 = vld [vmem:[%s6 + $0xc] sm:$0xf]
  %v183 = vld [vmem:[%s6 + $0x10] sm:$0xf]
  %v184 = vld [vmem:[%s6 + $0x14] sm:$0xf]
  %v185 = vld [vmem:[%s6 + $0x18] sm:$0xf]
  %v186 = vld [vmem:[%s6 + $0x1c] sm:$0xf]
  %v187 = vld [vmem:[%s6 + $0x20] sm:$0xf]
  %v188 = vld [vmem:[%s6 + $0x24] sm:$0xf]
  %v189 = vld [vmem:[%s6 + $0x28] sm:$0xf]
  %v190 = vld [vmem:[%s6 + $0x2c] sm:$0xf]
  %v191 = vld [vmem:[%s6 + $0x30] sm:$0xf]
  %v192 = vld [vmem:[%s6 + $0x34] sm:$0xf]
  %v193 = vld [vmem:[%s6 + $0x38] sm:$0xf]
  %v194 = vld [vmem:[%s6 + $0x3c] sm:$0xf]
  %v195 = vld [vmem:[%s7] sm:$0x1]
  %v197 = vlaneseq
  %v198 = vshrl.u32 %v197, 7
  %v199 = vsub.s32 0, %v198
  %v200 = vrot.slane %v195, %v199
  %v218 = vunpack.c.l.b16 %v179
  %v219 = vunpack.c.l.b16 %v180
  %v220 = vunpack.c.l.b16 %v181
  %v221 = vunpack.c.l.b16 %v182
  %v222 = vunpack.c.l.b16 %v183
  %v223 = vunpack.c.l.b16 %v184
  %v224 = vunpack.c.l.b16 %v185
  %v225 = vunpack.c.l.b16 %v186
  %v226 = vunpack.c.l.b16 %v187
  %v227 = vunpack.c.l.b16 %v188
  %v228 = vunpack.c.l.b16 %v189
  %v229 = vunpack.c.l.b16 %v190
  %v230 = vunpack.c.l.b16 %v191
  %v231 = vunpack.c.l.b16 %v192
  %v232 = vunpack.c.l.b16 %v193
  %v233 = vunpack.c.l.b16 %v194
  %v234 = vpack.c.b16 %v219, %v218
  %v235 = vpack.c.b16 %v221, %v220
  %v236 = vpack.c.b16 %v223, %v222
  %v237 = vpack.c.b16 %v225, %v224
  %v238 = vpack.c.b16 %v227, %v226
  %v239 = vpack.c.b16 %v229, %v228
  %v240 = vpack.c.b16 %v231, %v230
  %v241 = vpack.c.b16 %v233, %v232
  %250 = vmatprep.subr.bf16.mxu0 0
  %251 = vmatpush1.bf16.msra.mxu0 %v241
  %252 = vmatprep.subr.bf16.mxu0 0
  %253 = vmatpush1.bf16.msra.mxu0 %v240
  %254 = vmatprep.subr.bf16.mxu0 0
  %255 = vmatpush1.bf16.msra.mxu0 %v239
  %256 = vmatprep.subr.bf16.mxu0 0
  %257 = vmatpush1.bf16.msra.mxu0 %v238
  %258 = vmatprep.subr.bf16.mxu0 0
  %259 = vmatpush1.bf16.msra.mxu0 %v237
  %260 = vmatprep.subr.bf16.mxu0 0
  %261 = vmatpush1.bf16.msra.mxu0 %v236
  %262 = vmatprep.subr.bf16.mxu0 0
  %263 = vmatpush1.bf16.msra.mxu0 %v235
  %264 = vmatprep.subr.bf16.mxu0 0
  %265 = vmatpush1.bf16.msra.mxu0 %v234
  %266 = vmatprep.subr.bf16.mxu0 0
  %267 = vmatpush2.bf16.msra.mxu0 0
  %268 = vmatprep.subr.bf16.mxu0 0
  %269 = vmatpush2.bf16.msra.mxu0 0
  %270 = vmatprep.subr.bf16.mxu0 0
  %271 = vmatpush2.bf16.msra.mxu0 0
  %272 = vmatprep.subr.bf16.mxu0 0
  %273 = vmatpush2.bf16.msra.mxu0 0
  %274 = vmatprep.subr.bf16.mxu0 0
  %275 = vmatpush2.bf16.msra.mxu0 0
  %276 = vmatprep.subr.bf16.mxu0 0
  %277 = vmatpush2.bf16.msra.mxu0 0
  %278 = vmatprep.subr.bf16.mxu0 0
  %279 = vmatpush2.bf16.msra.mxu0 0
  %280 = vmatprep.subr.bf16.mxu0 0
  %281 = vmatpush2.bf16.msra.mxu0 0
  %282 = vmatprep.mubr.bf16.mxu0 0
  %283 = vmatmul.mubr.bf16.gmra.mxu0 %v178
  %v284 = vpop.f32.mrf.mxu0
  %v285 = vadd.f32 %v200, %v284
  %v286 = vpop.f32.mrf.mxu0
  %v287 = vpop.f32.mrf.mxu0
  %v288 = vadd.f32 %v200, %v287
  %v289 = vpop.f32.mrf.mxu0
  %290 = vdwg.mxu0
  %v291 = vsub.f32 %v285, %v30
  %v292 = vsub.f32 %v288, %v31
  %v293 = vmul.f32 %v291, %v291
  %v294 = vmul.f32 %v292, %v292
  %295 = vst [vmem:[%s8] sm:$0xff] %v293
  %296 = vst [vmem:[%s8 + $0x8] sm:$0xff] %v294
  // Predicated region
  $region34: #{gaussian_diffusion_trainer_forward.1} parent=0 // pred_check
    _
  $region35: #{gaussian_diffusion_trainer_forward.1} parent=0 // pred_check_branch
    %298 = sbr.rel (0) target = $region37
  $region36: #{gaussian_diffusion_trainer_forward.1} parent=0 // pred_region
    _
  $region37: #{gaussian_diffusion_trainer_forward.1} parent=0 // pred_fallthru
    _
  // Predicated region
  $region38: #{gaussian_diffusion_trainer_forward.1} parent=0 // pred_check
    _
  $region39: #{gaussian_diffusion_trainer_forward.1} parent=0 // pred_check_branch
    %300 = sbr.rel (0) target = $region41
  $region40: #{gaussian_diffusion_trainer_forward.1} parent=0 // pred_region
    _
  $region41: #{gaussian_diffusion_trainer_forward.1} parent=0 // pred_fallthru
    _

</llo_original>
